<compile_context>
chip_gen: v5e
topology: v5e:2x2
jax: 0.10.0
libtpu: 0.0.40
codegen_flags: <defaults>
</compile_context>

<pallas_src>
import functools

import jax
import jax.numpy as jnp
from jax.experimental import pallas as pl
from jax.experimental.pallas import tpu as pltpu

EPS = 1e-5
_MIB = 1024 * 1024


def _round_up(v, m):
    return (v + m - 1) // m * m


def _cdiv(a, b):
    return -(-a // b)


def _vmem_target_bytes():
    """Generation-aware VMEM budget, with headroom below the physical cap."""
    cap = 64 * _MIB
    try:
        cap = int(pltpu.get_tpu_info().vmem_capacity_bytes)
    except Exception:
        pass
    if cap <= 64 * _MIB:                     # v7x-class: 64 MiB per TensorCore
        return 48 * _MIB
    return min(cap - 16 * _MIB, 112 * _MIB)  # v5e / v6e: 128 MiB physical


# --------------------------------------------------------------------------
# Fused path: whole batch resident per feature tile.  Grid = (J, K).
# --------------------------------------------------------------------------
def _fused_kernel(x_ref, wt_ref, g_ref, b_ref, o_ref, *scratch, inv_n,
                  pad_rows):
    # x_ref: (Np, tk); wt_ref: (tk, tn); g/b_ref: (1, tn) f32
    # o_ref: (Np, tn) resident across K; scratch: optional f32 accumulator
    acc = scratch[0] if scratch else o_ref          # f32 accumulate into o_ref
    k = pl.program_id(1)

    @pl.when(k == 0)
    def _():
        acc[...] = jnp.zeros_like(acc)

    acc[...] += jnp.dot(x_ref[...], wt_ref[...],
                        preferred_element_type=jnp.float32)

    @pl.when(k == pl.num_programs(1) - 1)
    def _():
        y = acc[...]                                        # (Np, tn) f32
        mean = jnp.sum(y, axis=0, keepdims=True) * inv_n    # true-N mean
        yc = y - mean
        ss = jnp.sum(yc * yc, axis=0, keepdims=True)
        if pad_rows:                                        # zero-padded rows
            ss = ss - pad_rows * (mean * mean)              # contribute mean^2
        var = ss * inv_n
        scale = g_ref[...] * jax.lax.rsqrt(var + EPS)       # folded affine
        o_ref[...] = jnp.maximum(yc * scale + b_ref[...],
                                 0.0).astype(o_ref.dtype)


# --------------------------------------------------------------------------
# Two-pass path (large N): pass 1 = batch-tiled matmul + partial BN sums,
# pass 2 = batch-tiled normalize + ReLU.  Grid1 = (B, J, K), Grid2 = (B, J).
# --------------------------------------------------------------------------
def _matmul_stats_kernel(x_ref, wt_ref, y_ref, s_ref, q_ref):
    k = pl.program_id(2)

    @pl.when(k == 0)
    def _():
        y_ref[...] = jnp.zeros_like(y_ref)

    y_ref[...] += jnp.dot(x_ref[...], wt_ref[...],
                          preferred_element_type=jnp.float32)

    @pl.when(k == pl.num_programs(2) - 1)
    def _():
        y = y_ref[...]
        s_ref[...] = jnp.sum(y, axis=0, keepdims=True)[None]       # (1,1,tn)
        q_ref[...] = jnp.sum(y * y, axis=0, keepdims=True)[None]   # (1,1,tn)


def _bn_apply_kernel(y_ref, scale_ref, shift_ref, o_ref):
    o_ref[...] = jnp.maximum(
        y_ref[...] * scale_ref[...] + shift_ref[...], 0.0).astype(o_ref.dtype)


# --------------------------------------------------------------------------
# Wrapper
# --------------------------------------------------------------------------
@functools.partial(jax.jit, static_argnames=("bn_domain", "force_two_pass"))
def fc_bn_relu_domain(x, weight, bias, gamma_all, beta_all, bn_domain=0,
                      force_two_pass=False):
    """x: (N, in_dim); weight: (out_dim, in_dim); bias: (out_dim,)
    gamma_all/beta_all: (num_domains, out_dim).  Returns (N, out_dim).

    `bias` is accepted for API parity with nn.Linear but unused: training-mode
    BatchNorm subtracts the batch mean, which cancels the bias exactly.
    """
    del bias
    n, in_dim = x.shape
    out_dim = weight.shape[0]
    in_isz = x.dtype.itemsize
    out_isz = in_isz
    is_f32 = x.dtype == jnp.float32

    sub = 16 if in_isz == 2 else 8                 # sublane multiple per dtype
    n_pad = _round_up(n, sub)
    in_dim_p = _round_up(in_dim, 128)
    out_dim_p = _round_up(out_dim, 128)

    # Wider tn fills the 2x256 MXU; keep >=2 feature tiles when possible so the
    # "parallel" axis can split across v7x's 2 TensorCores.
    tn = 256 if (out_dim_p >= 512 and out_dim_p % 256 == 0) else 128
    target = _vmem_target_bytes()

    # BN params: domain-selected, f32, lane-padded.
    gamma = gamma_all[bn_domain].astype(jnp.float32)
    beta = beta_all[bn_domain].astype(jnp.float32)
    if out_dim_p != out_dim:
        gamma = jnp.pad(gamma, (0, out_dim_p - out_dim))
        beta = jnp.pad(beta, (0, out_dim_p - out_dim))
    gamma = gamma.reshape(1, out_dim_p)
    beta = beta.reshape(1, out_dim_p)

    wt = weight.T.astype(x.dtype)                  # native MXU operand dtype

    def pick_tk(rows, fixed_bytes):
        """Largest K chunk whose double-buffered blocks fit the VMEM target."""
        def fits(tk):
            return (2 * rows * tk * in_isz + 2 * tk * tn * in_isz
                    + fixed_bytes) <= target
        if fits(in_dim_p):                         # single K step: x streamed
            return in_dim_p, in_dim_p              # from HBM exactly once
        for tk_max in (2048, 1024, 512, 256):      # amortize per-step overhead
            kk = _cdiv(in_dim_p, tk_max)
            tk = _round_up(_cdiv(in_dim_p, kk), 128)
            if fits(tk):
                return tk, tk * _cdiv(in_dim_p, tk)
        return None, None

    # ---------------- fused path (whole batch resident) ------------------
    fused_fixed = (2 * n_pad * tn * out_isz            # out blocks
                   + 2 * 2 * tn * 4 * 2                # gamma + beta (f32)
                   + (0 if is_f32 else n_pad * tn * 4))  # acc scratch
    if force_two_pass:
        tk_f, in_pp_f = None, None
    else:
        tk_f, in_pp_f = pick_tk(n_pad, fused_fixed)

    if tk_f is not None:
        tk, in_dim_pp = tk_f, in_pp_f
        xp = x
        if (n_pad, in_dim_pp) != (n, in_dim):
            xp = jnp.pad(x, ((0, n_pad - n), (0, in_dim_pp - in_dim)))
        wtp = wt
        if (in_dim_pp, out_dim_p) != (in_dim, out_dim):
            wtp = jnp.pad(wt, ((0, in_dim_pp - in_dim),
                               (0, out_dim_p - out_dim)))

        grid = (out_dim_p // tn, in_dim_pp // tk)
        kernel = functools.partial(_fused_kernel, inv_n=1.0 / n,
                                   pad_rows=n_pad - n)
        scratch = [] if is_f32 else [pltpu.VMEM((n_pad, tn), jnp.float32)]

        footprint = (2 * n_pad * tk * in_isz + 2 * tk * tn * in_isz
                     + fused_fixed)
        vmem_limit = int(min(max(footprint + 8 * _MIB, 16 * _MIB), target))
        x_reads = grid[0] if grid[1] > 1 else 1
        cost = pl.CostEstimate(
            flops=int(2.0 * n * in_dim_pp * out_dim_p + 7.0 * n * out_dim_p),
            transcendentals=int(out_dim_p),
            bytes_accessed=int(x_reads * n_pad * in_dim_pp * in_isz
                               + in_dim_pp * out_dim_p * in_isz
                               + n_pad * out_dim_p * out_isz
                               + 2 * out_dim_p * 4))

        out_p = pl.pallas_call(
            kernel,
            out_shape=jax.ShapeDtypeStruct((n_pad, out_dim_p), x.dtype),
            grid_spec=pltpu.PrefetchScalarGridSpec(
                num_scalar_prefetch=0,
                grid=grid,
                in_specs=[
                    pl.BlockSpec((n_pad, tk), lambda j, k: (0, k)),
                    pl.BlockSpec((tk, tn), lambda j, k: (k, j)),
                    pl.BlockSpec((1, tn), lambda j, k: (0, j)),
                    pl.BlockSpec((1, tn), lambda j, k: (0, j)),
                ],
                out_specs=pl.BlockSpec((n_pad, tn), lambda j, k: (0, j)),
                scratch_shapes=scratch,
            ),
            compiler_params=pltpu.CompilerParams(
                dimension_semantics=("parallel", "arbitrary"),
                vmem_limit_bytes=vmem_limit),
            cost_estimate=cost,
        )(xp, wtp, gamma, beta)
        return out_p[:n, :out_dim]

    # ---------------- two-pass path (batch-tiled BN) ----------------------
    tb = _round_up(min(512, n_pad), sub)
    n_pad2 = _round_up(n_pad, tb)
    bgrid = n_pad2 // tb

    pass1_fixed = 2 * tb * tn * 4 + 2 * 2 * tn * 4      # y blocks + s/q blocks
    tk, in_dim_pp = pick_tk(tb, pass1_fixed)
    if tk is None:                                       # last resort
        tk, in_dim_pp = 256, _round_up(in_dim_p, 256)

    xp = x
    if (n_pad2, in_dim_pp) != (n, in_dim):
        xp = jnp.pad(x, ((0, n_pad2 - n), (0, in_dim_pp - in_dim)))
    wtp = wt
    if (in_dim_pp, out_dim_p) != (in_dim, out_dim):
        wtp = jnp.pad(wt, ((0, in_dim_pp - in_dim), (0, out_dim_p - out_dim)))

    jgrid = out_dim_p // tn
    kgrid = in_dim_pp // tk

    fp1 = 2 * tb * tk * in_isz + 2 * tk * tn * in_isz + pass1_fixed
    vmem1 = int(min(max(fp1 + 8 * _MIB, 16 * _MIB), target))
    x_reads1 = jgrid if kgrid > 1 else 1
    cost1 = pl.CostEstimate(
        flops=int(2.0 * n_pad2 * in_dim_pp * out_dim_p),
        transcendentals=0,
        bytes_accessed=int(x_reads1 * n_pad2 * in_dim_pp * in_isz
                           + bgrid * in_dim_pp * out_dim_p * in_isz
                           + n_pad2 * out_dim_p * 4
                           + 2 * bgrid * out_dim_p * 4))

    y_f32, s_part, q_part = pl.pallas_call(
        _matmul_stats_kernel,
        out_shape=(
            jax.ShapeDtypeStruct((n_pad2, out_dim_p), jnp.float32),
            jax.ShapeDtypeStruct((bgrid, 1, out_dim_p), jnp.float32),
            jax.ShapeDtypeStruct((bgrid, 1, out_dim_p), jnp.float32),
        ),
        grid_spec=pltpu.PrefetchScalarGridSpec(
            num_scalar_prefetch=0,
            grid=(bgrid, jgrid, kgrid),
            in_specs=[
                pl.BlockSpec((tb, tk), lambda b, j, k: (b, k)),
                pl.BlockSpec((tk, tn), lambda b, j, k: (k, j)),
            ],
            out_specs=(
                pl.BlockSpec((tb, tn), lambda b, j, k: (b, j)),
                pl.BlockSpec((1, 1, tn), lambda b, j, k: (b, 0, j)),
                pl.BlockSpec((1, 1, tn), lambda b, j, k: (b, 0, j)),
            ),
        ),
        compiler_params=pltpu.CompilerParams(
            dimension_semantics=("parallel", "parallel", "arbitrary"),
            vmem_limit_bytes=vmem1),
        cost_estimate=cost1,
    )(xp, wtp)

    # Tiny per-feature reduction + folded affine (done on (bgrid, out_dim_p)).
    inv_n = 1.0 / n                                 # true N; padded rows are 0
    mean = jnp.sum(s_part[:, 0, :], axis=0, keepdims=True) * inv_n
    # E[y^2] - mean^2 in f32; centered form is impossible without a 3rd pass.
    var = jnp.maximum(jnp.sum(q_part[:, 0, :], axis=0, keepdims=True) * inv_n
                      - mean * mean, 0.0)
    scale = gamma * jax.lax.rsqrt(var + EPS)        # (1, out_dim_p)
    shift = beta - mean * scale

    fp2 = 2 * tb * tn * 4 + 2 * tb * tn * out_isz + 2 * 2 * tn * 4 * 2
    vmem2 = int(min(max(fp2 + 8 * _MIB, 16 * _MIB), target))
    cost2 = pl.CostEstimate(
        flops=int(3.0 * n_pad2 * out_dim_p), transcendentals=0,
        bytes_accessed=int(n_pad2 * out_dim_p * (4 + out_isz)))

    out_p = pl.pallas_call(
        _bn_apply_kernel,
        out_shape=jax.ShapeDtypeStruct((n_pad2, out_dim_p), x.dtype),
        grid_spec=pltpu.PrefetchScalarGridSpec(
            num_scalar_prefetch=0,
            grid=(bgrid, jgrid),
            in_specs=[
                pl.BlockSpec((tb, tn), lambda b, j: (b, j)),
                pl.BlockSpec((1, tn), lambda b, j: (0, j)),
                pl.BlockSpec((1, tn), lambda b, j: (0, j)),
            ],
            out_specs=pl.BlockSpec((tb, tn), lambda b, j: (b, j)),
        ),
        compiler_params=pltpu.CompilerParams(
            dimension_semantics=("parallel", "parallel"),
            vmem_limit_bytes=vmem2),
        cost_estimate=cost2,
    )(y_f32, scale, shift)
    return out_p[:n, :out_dim]


def reference(x, weight, bias, gamma_all, beta_all, bn_domain=0):
    y = x @ weight.T + bias
    mean = jnp.mean(y, axis=0, keepdims=True)
    var = jnp.mean((y - mean) ** 2, axis=0, keepdims=True)
    yhat = (y - mean) / jnp.sqrt(var + EPS)
    out = gamma_all[bn_domain] * yhat + beta_all[bn_domain]
    return jnp.maximum(out, 0.0)


if __name__ == "__main__":
    # Small shapes consistent with the module: FC(in_dim=32 -> out_dim=64),
    # batch=8, num_domains_bn=2.
    N, IN_DIM, OUT_DIM, NUM_DOMAINS = 8, 32, 64, 2

    key = jax.random.PRNGKey(0)
    kx, kw, kb, kg, kbeta = jax.random.split(key, 5)

    x = jax.random.normal(kx, (N, IN_DIM), dtype=jnp.float32)

    # nn.Linear default init: U(-1/sqrt(in_dim), 1/sqrt(in_dim))
    bound = 1.0 / (IN_DIM ** 0.5)
    weight = jax.random.uniform(kw, (OUT_DIM, IN_DIM), jnp.float32,
                                minval=-bound, maxval=bound)
    bias = jax.random.uniform(kb, (OUT_DIM,), jnp.float32,
                              minval=-bound, maxval=bound)

    # Per-domain BatchNorm1d affine params.
    gamma_all = 1.0 + 0.1 * jax.random.normal(kg, (NUM_DOMAINS, OUT_DIM),
                                              jnp.float32)
    beta_all = 0.1 * jax.random.normal(kbeta, (NUM_DOMAINS, OUT_DIM),
                                       jnp.float32)

    ref = reference(x, weight, bias, gamma_all, beta_all, bn_domain=1)

    # Fused single-call path (default for shapes that fit VMEM).
    out = fc_bn_relu_domain(x, weight, bias, gamma_all, beta_all, bn_domain=1)
    out = jax.block_until_ready(out)
    assert out.shape == (N, OUT_DIM)
    assert jnp.allclose(out, ref, atol=1e-4, rtol=1e-4), "fused path mismatch"

    # Exercise the batch-tiled two-pass path (used automatically for large N).
    out2 = fc_bn_relu_domain(x, weight, bias, gamma_all, beta_all,
                             bn_domain=1, force_two_pass=True)
    out2 = jax.block_until_ready(out2)
    assert jnp.allclose(out2, ref, atol=1e-4, rtol=1e-4), "two-pass mismatch"

    print("KERNEL_OK")
</pallas_src>

<mosaic_0001>
module attributes {stable_mosaic.version = 11 : i64} {
  func.func @_fused_kernel(%arg0: i32, %arg1: i32, %arg2: memref<8x128xf32, #tpu.memory_space<vmem>>, %arg3: memref<128x128xf32, #tpu.memory_space<vmem>>, %arg4: memref<1x128xf32, #tpu.memory_space<vmem>>, %arg5: memref<1x128xf32, #tpu.memory_space<vmem>>, %arg6: memref<8x128xf32, #tpu.memory_space<vmem>>) attributes {dimension_semantics = [#tpu.dimension_semantics<parallel>, #tpu.dimension_semantics<arbitrary>], iteration_bounds = array<i64: 1, 1>, scalar_prefetch = 0 : i64, scratch_operands = 0 : i64, tpu.core_type = #tpu.core_type<tc>, window_params = [{transform_indices = @transform_0, window_bounds = array<i64: 8, 128>}, {transform_indices = @transform_1, window_bounds = array<i64: 128, 128>}, {transform_indices = @transform_2, window_bounds = array<i64: 1, 128>}, {transform_indices = @transform_3, window_bounds = array<i64: 1, 128>}, {transform_indices = @transform_4, window_bounds = array<i64: 8, 128>}]} {
    %c0_i32 = arith.constant 0 : i32
    %0 = arith.cmpi eq, %arg1, %c0_i32 : i32
    %1 = arith.extui %0 : i1 to i32
    %c0_i32_0 = arith.constant 0 : i32
    %2 = arith.cmpi ne, %1, %c0_i32_0 : i32
    scf.if %2 {
      %cst_10 = arith.constant 0.000000e+00 : f32
      %12 = vector.broadcast %cst_10 : f32 to vector<8x128xf32>
      %c0_11 = arith.constant 0 : index
      %c0_12 = arith.constant 0 : index
      %13 = vector.load %arg6[%c0_11, %c0_12] : memref<8x128xf32, #tpu.memory_space<vmem>>, vector<8x128xf32>
      tpu.vector_store %arg6[%c0_11, %c0_12], %12 {strides = array<i32>} : memref<8x128xf32, #tpu.memory_space<vmem>>, vector<8x128xf32>,
    } else {
    }
    %c0 = arith.constant 0 : index
    %c0_1 = arith.constant 0 : index
    %3 = vector.load %arg6[%c0, %c0_1] : memref<8x128xf32, #tpu.memory_space<vmem>>, vector<8x128xf32>
    %c0_2 = arith.constant 0 : index
    %c0_3 = arith.constant 0 : index
    %4 = vector.load %arg2[%c0_2, %c0_3] : memref<8x128xf32, #tpu.memory_space<vmem>>, vector<8x128xf32>
    %c0_4 = arith.constant 0 : index
    %c0_5 = arith.constant 0 : index
    %5 = vector.load %arg3[%c0_4, %c0_5] : memref<128x128xf32, #tpu.memory_space<vmem>>, vector<128x128xf32>
    %cst = arith.constant dense<0.000000e+00> : vector<8x128xf32>
    %6 = tpu.matmul %4, %5, %cst {dimension_numbers = #tpu.dot_dimension_numbers<[1], [0], [0], [1], [0, 0, 1, 1], [], []>} : vector<8x128xf32>, vector<128x128xf32>, vector<8x128xf32> -> vector<8x128xf32>
    %7 = arith.addf %3, %6 : vector<8x128xf32>
    %c0_6 = arith.constant 0 : index
    %c0_7 = arith.constant 0 : index
    %8 = vector.load %arg6[%c0_6, %c0_7] : memref<8x128xf32, #tpu.memory_space<vmem>>, vector<8x128xf32>
    tpu.vector_store %arg6[%c0_6, %c0_7], %7 {strides = array<i32>} : memref<8x128xf32, #tpu.memory_space<vmem>>, vector<8x128xf32>,
    %c0_i32_8 = arith.constant 0 : i32
    %9 = arith.cmpi eq, %arg1, %c0_i32_8 : i32
    %10 = arith.extui %9 : i1 to i32
    %c0_i32_9 = arith.constant 0 : i32
    %11 = arith.cmpi ne, %10, %c0_i32_9 : i32
    scf.if %11 {
      %c0_10 = arith.constant 0 : index
      %c0_11 = arith.constant 0 : index
      %12 = vector.load %arg6[%c0_10, %c0_11] : memref<8x128xf32, #tpu.memory_space<vmem>>, vector<8x128xf32>
      %cst_12 = arith.constant dense<0.000000e+00> : vector<128xf32>
      %13 = vector.multi_reduction <add>, %12, %cst_12 [0] : vector<8x128xf32> to vector<128xf32>
      %14 = vector.shape_cast %13 : vector<128xf32> to vector<1x128xf32>
      %cst_13 = arith.constant 1.250000e-01 : f32
      %15 = vector.broadcast %cst_13 : f32 to vector<1x128xf32>
      %16 = arith.mulf %14, %15 : vector<1x128xf32>
      %17 = vector.broadcast %16 : vector<1x128xf32> to vector<8x128xf32>
      %18 = arith.subf %12, %17 : vector<8x128xf32>
      %19 = arith.mulf %18, %18 : vector<8x128xf32>
      %cst_14 = arith.constant dense<0.000000e+00> : vector<128xf32>
      %20 = vector.multi_reduction <add>, %19, %cst_14 [0] : vector<8x128xf32> to vector<128xf32>
      %21 = vector.shape_cast %20 : vector<128xf32> to vector<1x128xf32>
      %cst_15 = arith.constant 1.250000e-01 : f32
      %22 = vector.broadcast %cst_15 : f32 to vector<1x128xf32>
      %23 = arith.mulf %21, %22 : vector<1x128xf32>
      %c0_16 = arith.constant 0 : index
      %c0_17 = arith.constant 0 : index
      %24 = vector.load %arg4[%c0_16, %c0_17] : memref<1x128xf32, #tpu.memory_space<vmem>>, vector<1x128xf32>
      %cst_18 = arith.constant 9.99999974E-6 : f32
      %25 = vector.broadcast %cst_18 : f32 to vector<1x128xf32>
      %26 = arith.addf %23, %25 : vector<1x128xf32>
      %27 = math.rsqrt %26 : vector<1x128xf32>
      %28 = arith.mulf %24, %27 : vector<1x128xf32>
      %29 = vector.broadcast %28 : vector<1x128xf32> to vector<8x128xf32>
      %30 = arith.mulf %18, %29 : vector<8x128xf32>
      %c0_19 = arith.constant 0 : index
      %c0_20 = arith.constant 0 : index
      %31 = vector.load %arg5[%c0_19, %c0_20] : memref<1x128xf32, #tpu.memory_space<vmem>>, vector<1x128xf32>
      %32 = vector.broadcast %31 : vector<1x128xf32> to vector<8x128xf32>
      %33 = arith.addf %30, %32 : vector<8x128xf32>
      %cst_21 = arith.constant 0.000000e+00 : f32
      %34 = vector.broadcast %cst_21 : f32 to vector<8x128xf32>
      %35 = arith.maximumf %33, %34 : vector<8x128xf32>
      %c0_22 = arith.constant 0 : index
      %c0_23 = arith.constant 0 : index
      %36 = vector.load %arg6[%c0_22, %c0_23] : memref<8x128xf32, #tpu.memory_space<vmem>>, vector<8x128xf32>
      tpu.vector_store %arg6[%c0_22, %c0_23], %35 {strides = array<i32>} : memref<8x128xf32, #tpu.memory_space<vmem>>, vector<8x128xf32>,
    } else {
    }
    return
  }
  func.func @transform_0(%arg0: i32, %arg1: i32) -> (i32, i32) {
    %c0_i32 = arith.constant 0 : i32
    %c0_i32_0 = arith.constant 0 : i32
    return %c0_i32, %arg1 : i32, i32
  }
  func.func @transform_1(%arg0: i32, %arg1: i32) -> (i32, i32) {
    %c0_i32 = arith.constant 0 : i32
    return %arg1, %arg0 : i32, i32
  }
  func.func @transform_2(%arg0: i32, %arg1: i32) -> (i32, i32) {
    %c0_i32 = arith.constant 0 : i32
    %c0_i32_0 = arith.constant 0 : i32
    return %c0_i32, %arg0 : i32, i32
  }
  func.func @transform_3(%arg0: i32, %arg1: i32) -> (i32, i32) {
    %c0_i32 = arith.constant 0 : i32
    %c0_i32_0 = arith.constant 0 : i32
    return %c0_i32, %arg0 : i32, i32
  }
  func.func @transform_4(%arg0: i32, %arg1: i32) -> (i32, i32) {
    %c0_i32 = arith.constant 0 : i32
    %c0_i32_0 = arith.constant 0 : i32
    return %c0_i32, %arg0 : i32, i32
  }
}

</mosaic_0001>

<llo_original>
// kernel: fc_bn_relu_domain.1
$region0: #{fc_bn_relu_domain.1}
  #allocation0 [shape = 'u32[]', space=smem, size = 0x4, offset = 0x4, fixed_abs, tag = 'smem constant byte address 0x4 - core index']
  #allocation1 [shape = 'u32[72,128]{1,0:T(1,128)}', space=vmem, size = 0x9000, scoped, tag = 'internal scratch']
  %s0 = inlined_call_operand.vmem [shape: f32[8,128], index: 0, kind: input, shape index: {}]
  %s1 = inlined_call_operand.vmem [shape: f32[128,128], index: 1, kind: input, shape index: {}]
  %s2 = inlined_call_operand.vmem [shape: f32[1,128], index: 2, kind: input, shape index: {}]
  %s3 = inlined_call_operand.vmem [shape: f32[1,128], index: 3, kind: input, shape index: {}]
  %s4 = inlined_call_operand.hbm [shape: f32[8,128], index: 4, kind: output, shape index: {}]
  %s5 = sld [smem:[#allocation0]]
  $region34: #{fc_bn_relu_domain.1} parent=0
    _
  %s7 = ssub.s32 1, %s5
  %s8 = scalar_select 0, %s7, %s5
  $region1: #{fc_bn_relu_domain.1} parent=0
    #allocation2 [shape = 'u8[4096]{0}', space=vmem, size = 0x1000, scoped, tag = 'output window, operand 0, single buffered']
    #allocation3 [shape = 's32[1]{0}', space=sflag, size = 0x4, scoped, tag = 'scoped memory for fc_bn_relu_domain.1']
    %9 = vsyncpa [#allocation3], 0
    // Predicated region
    $region2: #{fc_bn_relu_domain.1} parent=1 // pred_check
      _
    $region3: #{fc_bn_relu_domain.1} parent=1 // pred_check_branch
      %11 = sbr.rel (0) target = $region5
    $region4: #{fc_bn_relu_domain.1} parent=1 // pred_region
      _
    $region5: #{fc_bn_relu_domain.1} parent=1 // pred_fallthru
      _
    // Predicated region
    $region6: #{fc_bn_relu_domain.1} parent=1 // pred_check
      _
    $region7: #{fc_bn_relu_domain.1} parent=1 // pred_check_branch
      %13 = sbr.rel (0) target = $region9
    $region8: #{fc_bn_relu_domain.1} parent=1 // pred_region
      _
    $region9: #{fc_bn_relu_domain.1} parent=1 // pred_fallthru
      _
    // Predicated region
    $region10: #{fc_bn_relu_domain.1} parent=1 // pred_check
      _
    $region11: #{fc_bn_relu_domain.1} parent=1 // pred_check_branch
      %15 = sbr.rel (0) target = $region13
    $region12: #{fc_bn_relu_domain.1} parent=1 // pred_region
      _
    $region13: #{fc_bn_relu_domain.1} parent=1 // pred_fallthru
      _
    // Predicated region
    $region14: #{fc_bn_relu_domain.1} parent=1 // pred_check
      _
    $region15: #{fc_bn_relu_domain.1} parent=1 // pred_check_branch
      %17 = sbr.rel (0) target = $region17
    $region16: #{fc_bn_relu_domain.1} parent=1 // pred_region
      _
    $region17: #{fc_bn_relu_domain.1} parent=1 // pred_fallthru
      _
    %p18 = scmp.eq.s32.totalorder 0, 0
    // Predicated region
    $region18: #{fc_bn_relu_domain.1} parent=1 // pred_check
      %p19 = pneg %p18
    $region19: #{fc_bn_relu_domain.1} parent=1 // pred_check_branch
      %21 = sbr.rel (%p19) target = $region21
    $region20: #{fc_bn_relu_domain.1} parent=1 // pred_region
      %22 = vst [vmem:[#allocation2] sm:$0xff] 0.0
    $region21: #{fc_bn_relu_domain.1} parent=1 // pred_fallthru
      _
    %v23 = vld [vmem:[#allocation2] sm:$0xff]
    %v24 = vld [vmem:[%s0] sm:$0xff]
    %v25 = vld [vmem:[%s1] sm:$0xff]
    %v26 = vld [vmem:[%s1 + $0x8] sm:$0xff]
    %v27 = vld [vmem:[%s1 + $0x10] sm:$0xff]
    %v28 = vld [vmem:[%s1 + $0x18] sm:$0xff]
    %v29 = vld [vmem:[%s1 + $0x20] sm:$0xff]
    %v30 = vld [vmem:[%s1 + $0x28] sm:$0xff]
    %v31 = vld [vmem:[%s1 + $0x30] sm:$0xff]
    %v32 = vld [vmem:[%s1 + $0x38] sm:$0xff]
    %v33 = vld [vmem:[%s1 + $0x40] sm:$0xff]
    %v34 = vld [vmem:[%s1 + $0x48] sm:$0xff]
    %v35 = vld [vmem:[%s1 + $0x50] sm:$0xff]
    %v36 = vld [vmem:[%s1 + $0x58] sm:$0xff]
    %v37 = vld [vmem:[%s1 + $0x60] sm:$0xff]
    %v38 = vld [vmem:[%s1 + $0x68] sm:$0xff]
    %v39 = vld [vmem:[%s1 + $0x70] sm:$0xff]
    %v40 = vld [vmem:[%s1 + $0x78] sm:$0xff]
    %41 = vmatpush.msra.mxu0 %v40
    %42 = vmatpush.msra.mxu0 %v39
    %43 = vmatpush.msra.mxu0 %v38
    %44 = vmatpush.msra.mxu0 %v37
    %45 = vmatpush.msra.mxu0 %v36
    %46 = vmatpush.msra.mxu0 %v35
    %47 = vmatpush.msra.mxu0 %v34
    %48 = vmatpush.msra.mxu0 %v33
    %49 = vmatpush.msra.mxu0 %v32
    %50 = vmatpush.msra.mxu0 %v31
    %51 = vmatpush.msra.mxu0 %v30
    %52 = vmatpush.msra.mxu0 %v29
    %53 = vmatpush.msra.mxu0 %v28
    %54 = vmatpush.msra.mxu0 %v27
    %55 = vmatpush.msra.mxu0 %v26
    %56 = vmatpush.msra.mxu0 %v25
    %57 = vmatmul.f32.gmra.mxu0 %v24
    %v58 = vpop.f32.mrf.mxu0
    %v59 = vadd.f32 0.0, %v58
    %60 = vdwg.mxu0
    %v61 = vadd.f32 %v23, %v59
    %62 = vst [vmem:[#allocation2] sm:$0xff] %v61
    // Predicated region
    $region22: #{fc_bn_relu_domain.1} parent=1 // pred_check
      %p63 = pneg %p18
    $region23: #{fc_bn_relu_domain.1} parent=1 // pred_check_branch
      %65 = sbr.rel (%p63) target = $region25
    $region24: #{fc_bn_relu_domain.1} parent=1 // pred_region
      %v66 = vld [vmem:[#allocation2] sm:$0xff]
      %v67 = vrot.slane %v66, 4
      %v68 = vadd.f32 %v66, %v67
      %v69 = vrot.slane %v68, 2
      %v70 = vadd.f32 %v68, %v69
      %v71 = vrot.slane %v70, 1
      %v72 = vadd.f32 %v70, %v71
      %v73 = vmul.f32 %v72, 0.125
      %v74 = vsub.f32 %v66, %v73
      %v75 = vmul.f32 %v74, %v74
      %v76 = vrot.slane %v75, 4
      %v77 = vadd.f32 %v75, %v76
      %v78 = vrot.slane %v77, 2
      %v79 = vadd.f32 %v77, %v78
      %v80 = vrot.slane %v79, 1
      %v81 = vadd.f32 %v79, %v80
      %v82 = vmul.f32 %v81, 0.125
      %v83 = vld [vmem:[%s2] sm:$0x1]
      %v84 = vadd.f32 %v82, 1e-05
      %v85 = vrsqrt.pop %v84
      %v86 = vmul.f32 %v85, %v84
      %v87 = vmul.f32 %v86, %v85
      %v88 = vmul.f32 0.5, %v87
      %v89 = vsub.f32 1.5, %v88
      %v90 = vmul.f32 %v85, %v89
      %vm91 = vweird.f32 %v84
      %vm92 = vweird.f32 %v85
      %vm93 = vmor %vm91, %vm92
      %v94 = vsel %vm93, %v85, %v90
      %v95 = vmul.f32 %v83, %v94
      %v97 = vperm.slane %v95, 0
      %v99 = vmul.f32 %v74, %v97
      %v100 = vld [vmem:[%s3] sm:$0x1]
      %v102 = vperm.slane %v100, 0
      %v104 = vadd.f32 %v99, %v102
      %v105 = vmax.f32 %v104, 0.0
      %106 = vst [vmem:[#allocation2] sm:$0xff] %v105
    $region25: #{fc_bn_relu_domain.1} parent=1 // pred_fallthru
      _
    // Predicated region
    $region26: #{fc_bn_relu_domain.1} parent=1 // pred_check
      _
    $region27: #{fc_bn_relu_domain.1} parent=1 // pred_check_branch
      %108 = sbr.rel (0) target = $region29
    $region28: #{fc_bn_relu_domain.1} parent=1 // pred_region
      %110 = vsyncadd [#allocation3], 0
      %s112 = sshll.u32 [#allocation2], 4
      %s113 = int_to_ptr.vmem [resolvable:$true] %s112
      %s114 = sshll.u32 %s4, 4
      %s115 = int_to_ptr.hbm [resolvable:$true] %s114
      %117 = dma.vmem_to_hbm [thread:$0]  %s113, 128, %s115, [#allocation3]
    $region29: #{fc_bn_relu_domain.1} parent=1 // pred_fallthru
      _
    // Predicated region
    $region30: #{fc_bn_relu_domain.1} parent=1 // pred_check
      _
    $region31: #{fc_bn_relu_domain.1} parent=1 // pred_check_branch
      %119 = sbr.rel (0) target = $region33
    $region32: #{fc_bn_relu_domain.1} parent=1 // pred_region
      %121 = dma.done [#allocation3], 128
    $region33: #{fc_bn_relu_domain.1} parent=1 // pred_fallthru
      _
    %122 = vsyncpa [#allocation3], 1

</llo_original>
